<compile_context>
chip_gen: v5e
topology: v5e:2x2
jax: 0.10.0
libtpu: 0.0.40
codegen_flags: <defaults>
</compile_context>

<pallas_src>
import functools
import math

import numpy as np
import jax
import jax.numpy as jnp
from jax.experimental import pallas as pl
from jax.experimental.pallas import tpu as pltpu


def _round_up(a, b):
    return (a + b - 1) // b * b


# -----------------------------------------------------------------------------
# Pallas kernel 1: fused Conv2d(+BN folded) + ReLU + MaxPool2d, transposed layout
# -----------------------------------------------------------------------------
def _conv_pool_kernel(w_ref, p_ref, b_ref, o_ref, *, pp):
    # w: (Cout, K) bf16, p: (pp, K, TR) bf16 (pool-window-slot-major im2col),
    # b: (Cout, 1) f32, o: (Cout, TR) f32.
    # Bias is slot-invariant and ReLU is monotone, so
    #   maxpool(relu(conv + b)) == relu(max_s(dot_s) + b).
    acc = jnp.dot(w_ref[...], p_ref[0], preferred_element_type=jnp.float32)
    for s in range(1, pp):
        acc = jnp.maximum(
            acc, jnp.dot(w_ref[...], p_ref[s], preferred_element_type=jnp.float32))
    o_ref[...] = jnp.maximum(acc + b_ref[...], 0.0).astype(o_ref.dtype)


def im2col_nhwc(x, k, s, p):
    """(N,H,W,C) -> (N,Ho,Wo,k*k*C) patches.  Pure data movement (XLA glue)."""
    # TODO(synk): for large configs, gather the overlapping patches inside the
    #             kernel with manual DMA instead of materializing k*k copies in HBM.
    N, H, W, C = x.shape
    xp = jnp.pad(x, ((0, 0), (p, p), (p, p), (0, 0)))
    Ho = (H + 2 * p - k) // s + 1
    Wo = (W + 2 * p - k) // s + 1
    cols = []
    for ki in range(k):
        for kj in range(k):
            cols.append(xp[:, ki:ki + (Ho - 1) * s + 1:s,
                            kj:kj + (Wo - 1) * s + 1:s, :])
    patches = jnp.stack(cols, axis=3)                 # (N, Ho, Wo, k*k, C)
    return patches.reshape(N, Ho, Wo, k * k * C), Ho, Wo


def conv_bn_relu_pool(x_nhwc, w_eff, b_eff, k, s, p, pool, *, tr=512):
    """y = maxpool_p(relu(conv(x) + b)) with BN folded into w_eff/b_eff, NHWC in/out."""
    N, H, W, Cin = x_nhwc.shape
    K = k * k * Cin
    Cout = w_eff.shape[1]
    patches, Ho, Wo = im2col_nhwc(x_nhwc, k, s, p)    # (N, Ho, Wo, K)

    # MaxPool floor mode (torch default): crop H/W to multiples of the window.
    Hp, Wp = Ho // pool, Wo // pool
    pp = pool * pool
    pt = patches[:, :Hp * pool, :Wp * pool, :]
    pt = pt.reshape(N, Hp, pool, Wp, pool, K)
    # -> (pool_h, pool_w, K, N, Hp, Wp) -> (pp, K, R): slot-major columns so the
    # pool reduction is a plain elementwise max over the leading (slot) axis.
    pt = jnp.transpose(pt, (2, 4, 5, 0, 1, 3)).reshape(pp, K, N * Hp * Wp)
    R = N * Hp * Wp

    # Lane-dense tiling of the pooled-position axis (>=128 lanes, <=512 per tile;
    # double-buffered blocks stay far below v7x's 64 MiB VMEM at these sizes).
    TR = min(tr, _round_up(R, 128))
    Rp = _round_up(R, TR)
    if Rp != R:
        pt = jnp.pad(pt, ((0, 0), (0, 0), (0, Rp - R)))

    wT = jnp.transpose(w_eff).astype(jnp.bfloat16)    # (Cout, K), bf16 -> MXU

    out = pl.pallas_call(
        functools.partial(_conv_pool_kernel, pp=pp),
        out_shape=jax.ShapeDtypeStruct((Cout, Rp), jnp.float32),
        grid=(Rp // TR,),
        in_specs=[
            pl.BlockSpec((Cout, K), lambda i: (0, 0)),
            pl.BlockSpec((pp, K, TR), lambda i: (0, 0, i)),
            pl.BlockSpec((Cout, 1), lambda i: (0, 0)),
        ],
        out_specs=pl.BlockSpec((Cout, TR), lambda i: (0, i)),
        compiler_params=pltpu.CompilerParams(dimension_semantics=("parallel",)),
    )(wT, pt.astype(jnp.bfloat16), b_eff.reshape(Cout, 1).astype(jnp.float32))

    out = out[:, :R]                                  # drop lane padding
    return jnp.transpose(out.reshape(Cout, N, Hp, Wp), (1, 2, 3, 0))   # NHWC


# -----------------------------------------------------------------------------
# Pallas kernel 2: generic fused matmul + bias + activation
# -----------------------------------------------------------------------------
def _matmul_bias_act_kernel(x_ref, w_ref, b_ref, o_ref, *, act, scale):
    acc = jnp.dot(x_ref[...], w_ref[...], preferred_element_type=jnp.float32)
    acc = acc + b_ref[...]
    if act == "relu":
        acc = jnp.maximum(acc, 0.0)
    elif act == "relu_tanh":
        acc = jnp.tanh(jnp.maximum(acc, 0.0)) * scale
    o_ref[...] = acc.astype(o_ref.dtype)


def matmul_bias_act(x, w, b, act="none", scale=1.0, *, tm=512, dot_dtype=None):
    """out = act(x @ w + b);  x:(M,K)  w:(K,N)  b:(N,).  f32 epilogue/accum."""
    M, K = x.shape
    Kw, N = w.shape
    assert K == Kw
    # Pad rows to the f32 sublane (8) and tile with <=512-row tiles (cdiv grid,
    # padded tail); no whole-array fallback so VMEM use stays bounded.
    TM = min(tm, _round_up(M, 8))
    Mp = _round_up(M, TM)
    in_dt = dot_dtype if dot_dtype is not None else jnp.float32
    x = x.astype(in_dt)
    w = w.astype(in_dt)
    if Mp != M:
        x = jnp.pad(x, ((0, Mp - M), (0, 0)))
    out = pl.pallas_call(
        functools.partial(_matmul_bias_act_kernel, act=act, scale=scale),
        out_shape=jax.ShapeDtypeStruct((Mp, N), jnp.float32),
        grid=(Mp // TM,),
        in_specs=[
            pl.BlockSpec((TM, K), lambda i: (i, 0)),
            pl.BlockSpec((K, N), lambda i: (0, 0)),
            pl.BlockSpec((1, N), lambda i: (0, 0)),
        ],
        out_specs=pl.BlockSpec((TM, N), lambda i: (i, 0)),
        compiler_params=pltpu.CompilerParams(dimension_semantics=("parallel",)),
    )(x, w, b.reshape(1, N).astype(jnp.float32))
    return out[:M]


# -----------------------------------------------------------------------------
# Quantum circuit setup (parameter precompute, NumPy) + angle-embedding features
# -----------------------------------------------------------------------------
_I2 = np.eye(2, dtype=np.complex128)
_X = np.array([[0, 1], [1, 0]], dtype=np.complex128)
_Y = np.array([[0, -1j], [1j, 0]], dtype=np.complex128)
_P0 = np.array([[1, 0], [0, 0]], dtype=np.complex128)
_P1 = np.array([[0, 0], [0, 1]], dtype=np.complex128)


def _rz(a):
    return np.array([[np.exp(-0.5j * a), 0], [0, np.exp(0.5j * a)]], dtype=np.complex128)


def _ry(a):
    return np.array([[np.cos(a / 2), -np.sin(a / 2)],
                     [np.sin(a / 2), np.cos(a / 2)]], dtype=np.complex128)


def _rot(phi, theta, omega):
    # PennyLane Rot(phi, theta, omega) = RZ(omega) RY(theta) RZ(phi)
    return _rz(omega) @ _ry(theta) @ _rz(phi)


def _embed(n, ops):
    m = np.array([[1.0 + 0j]])
    for wire in range(n):          # wire 0 is most significant (PennyLane order)
        m = np.kron(m, ops.get(wire, _I2))
    return m


def _sel_unitary(weights, n):
    """Unitary of qml.StronglyEntanglingLayers(weights (reps, n, 3)), CNOT entanglers."""
    D = 2 ** n
    U = np.eye(D, dtype=np.complex128)
    reps = weights.shape[0]
    for layer in range(reps):
        for i in range(n):
            g = _embed(n, {i: _rot(weights[layer, i, 0],
                                   weights[layer, i, 1],
                                   weights[layer, i, 2])})
            U = g @ U
        if n > 1:
            r = (layer % (n - 1)) + 1
            for i in range(n):
                c, t = i, (i + r) % n
                U = (_embed(n, {c: _P0}) + _embed(n, {c: _P1, t: _X})) @ U
    return U


def quantum_features(h, L, n):
    """Angle-embedding product state |psi(x)> and the real features F such that
       expval_i = F . vec([Re M_i ; Im M_i]) with M_i = U^dag Y_i U."""
    # TODO(synk): the product-state (kron) construction has no clean Pallas tiling
    #             (2^n growth on tiny dims); it stays in plain JAX glue.
    B = h.shape[0]
    D = 2 ** n
    x = h.reshape(B, L, n)
    c = jnp.cos(x / 2).astype(jnp.complex64)
    s = jnp.sin(x / 2).astype(jnp.complex64)
    amp = jnp.ones((B, L, 1), dtype=jnp.complex64)
    for k in range(n):                                   # RX(x)|0> = [cos, -i sin]
        qk = jnp.stack([c[:, :, k], -1j * s[:, :, k]], axis=-1)   # (B, L, 2)
        amp = (amp[:, :, :, None] * qk[:, :, None, :]).reshape(B, L, -1)
    pr = jnp.real(amp)
    pim = jnp.imag(amp)
    A = pr[..., :, None] * pr[..., None, :] + pim[..., :, None] * pim[..., None, :]
    Bm = pim[..., :, None] * pr[..., None, :] - pr[..., :, None] * pim[..., None, :]
    F = jnp.concatenate([A.reshape(B, L, D * D), Bm.reshape(B, L, D * D)], axis=-1)
    return F.reshape(B, L * 2 * D * D)


# -----------------------------------------------------------------------------
# Model parameters (deterministic synthetic init, BatchNorm folded in eval mode)
# -----------------------------------------------------------------------------
def build_model(key, *, in_channels, num_classes, input_size, conv_channels,
                conv_kernels, conv_strides, conv_paddings, pool_sizes,
                num_qubits, num_qlayers, num_qreps):
    keys = iter(jax.random.split(key, 64))
    _, hh, ww = input_size
    conv_blocks = []
    prev_ch = in_channels
    for i in range(len(conv_channels)):
        out_ch, k = conv_channels[i], conv_kernels[i]
        s, p, pool = conv_strides[i], conv_paddings[i], pool_sizes[i]
        fan_in = prev_ch * k * k
        w_conv = jax.random.normal(next(keys), (out_ch, prev_ch, k, k), jnp.float32) / math.sqrt(fan_in)
        b_conv = 0.05 * jax.random.normal(next(keys), (out_ch,), jnp.float32)
        gamma = 1.0 + 0.1 * jax.random.normal(next(keys), (out_ch,), jnp.float32)
        beta = 0.1 * jax.random.normal(next(keys), (out_ch,), jnp.float32)
        r_mean = 0.1 * jax.random.normal(next(keys), (out_ch,), jnp.float32)
        r_var = 1.0 + 0.1 * jax.random.uniform(next(keys), (out_ch,), jnp.float32)
        inv = gamma / jnp.sqrt(r_var + 1e-5)
        # (Cout,Cin,k,k) -> (k,k,Cin,Cout) -> (k*k*Cin, Cout), BN folded into cols
        w_mat = jnp.transpose(w_conv, (2, 3, 1, 0)).reshape(k * k * prev_ch, out_ch) * inv[None, :]
        b_eff = (b_conv - r_mean) * inv + beta
        conv_blocks.append(dict(in_ch=prev_ch, out_ch=out_ch, k=k, s=s, p=p, pool=pool,
                                w_eff=w_mat, b_eff=b_eff))
        prev_ch = out_ch
        hh = (hh + 2 * p - k) // s + 1
        ww = (ww + 2 * p - k) // s + 1
        hh = (hh - pool) // pool + 1
        ww = (ww - pool) // pool + 1

    flat_dim = prev_ch * hh * ww
    num_q_features = num_qlayers * num_qubits

    fc1_w = jax.random.normal(next(keys), (flat_dim, num_q_features), jnp.float32) / math.sqrt(flat_dim)
    fc1_b = 0.05 * jax.random.normal(next(keys), (num_q_features,), jnp.float32)
    g1 = 1.0 + 0.1 * jax.random.normal(next(keys), (num_q_features,), jnp.float32)
    b1 = 0.1 * jax.random.normal(next(keys), (num_q_features,), jnp.float32)
    m1 = 0.1 * jax.random.normal(next(keys), (num_q_features,), jnp.float32)
    v1 = 1.0 + 0.1 * jax.random.uniform(next(keys), (num_q_features,), jnp.float32)
    inv1 = g1 / jnp.sqrt(v1 + 1e-5)
    fc1_w_eff = fc1_w * inv1[None, :]
    fc1_b_eff = (fc1_b - m1) * inv1 + b1

    # Quantum layers: precompute the fixed SEL unitary U_l and observables U^dag Y_i U
    D = 2 ** num_qubits
    sel = jax.random.uniform(next(keys), (num_qlayers, num_qreps, num_qubits, 3),
                             jnp.float32, 0.0, 2.0 * math.pi)
    sel_np = np.asarray(sel, dtype=np.float64)
    G = np.zeros((num_qlayers, num_qubits, 2 * D * D), dtype=np.float64)
    for l in range(num_qlayers):
        U = _sel_unitary(sel_np[l], num_qubits)
        for i in range(num_qubits):
            Mi = U.conj().T @ _embed(num_qubits, {i: _Y}) @ U
            G[l, i] = np.concatenate([Mi.real.reshape(-1), Mi.imag.reshape(-1)])

    fc2_w = jax.random.normal(next(keys), (num_q_features, num_classes), jnp.float32) / math.sqrt(num_q_features)
    fc2_b = 0.05 * jax.random.normal(next(keys), (num_classes,), jnp.float32)

    # Fold the (block-diagonal) quantum contraction and the final Linear weight
    # into ONE dense matrix: logits = F @ Wq_fused + fc2_b  (exact algebra).
    fc2_w_np = np.asarray(fc2_w, dtype=np.float64)
    Wq_fused = np.zeros((num_qlayers * 2 * D * D, num_classes), dtype=np.float64)
    for l in range(num_qlayers):
        Wq_fused[l * 2 * D * D:(l + 1) * 2 * D * D, :] = (
            G[l].T @ fc2_w_np[l * num_qubits:(l + 1) * num_qubits, :])

    return dict(conv_blocks=conv_blocks,
                fc1_w_eff=fc1_w_eff, fc1_b_eff=fc1_b_eff,
                Wq_fused=jnp.asarray(Wq_fused, jnp.float32),
                G=jnp.asarray(G, jnp.float32),
                fc2_w=fc2_w, fc2_b=fc2_b,
                num_qubits=num_qubits, num_qlayers=num_qlayers,
                num_classes=num_classes)


# -----------------------------------------------------------------------------
# Forward pass (Pallas kernels on every hot path)
# -----------------------------------------------------------------------------
def hqnn_forward(x_nchw, params):
    n, L = params["num_qubits"], params["num_qlayers"]
    x = jnp.transpose(x_nchw, (0, 2, 3, 1)).astype(jnp.float32)   # NCHW -> NHWC
    N = x.shape[0]
    for blk in params["conv_blocks"]:
        # Conv + BN(eval) + ReLU + MaxPool fused into one Pallas kernel (bf16 MXU).
        x = conv_bn_relu_pool(x, blk["w_eff"], blk["b_eff"],
                              blk["k"], blk["s"], blk["p"], blk["pool"])
    # torch Flatten(start_dim=1) flattens in (C, H, W) order
    flat = jnp.transpose(x, (0, 3, 1, 2)).reshape(N, -1)
    # Tail matmuls are tiny (M=batch): rows are padded to the sublane inside
    # matmul_bias_act; dot inputs kept f32 for precision (compute is negligible).
    h = matmul_bias_act(flat, params["fc1_w_eff"], params["fc1_b_eff"],
                        act="relu_tanh", scale=math.pi / 2)
    F = quantum_features(h, L, n)                                  # (N, L*2*4^n)
    # Quantum expvals + final Linear fused into a single matmul.
    out = matmul_bias_act(F, params["Wq_fused"], params["fc2_b"], act="none")
    return out


# -----------------------------------------------------------------------------
# Pure-JAX reference for validation (unfused, HIGHEST precision)
# -----------------------------------------------------------------------------
def reference_forward(x_nchw, params):
    hp = jax.lax.Precision.HIGHEST
    n, L = params["num_qubits"], params["num_qlayers"]
    D = 2 ** n
    x = jnp.transpose(x_nchw, (0, 2, 3, 1)).astype(jnp.float32)
    N = x.shape[0]
    for blk in params["conv_blocks"]:
        k, Cin, Cout = blk["k"], blk["in_ch"], blk["out_ch"]
        wf = blk["w_eff"].reshape(k, k, Cin, Cout)
        y = jax.lax.conv_general_dilated(
            x, wf, (blk["s"], blk["s"]),
            [(blk["p"], blk["p"]), (blk["p"], blk["p"])],
            dimension_numbers=("NHWC", "HWIO", "NHWC"), precision=hp)
        y = jnp.maximum(y + blk["b_eff"], 0.0)
        p = blk["pool"]
        x = jax.lax.reduce_window(y, -jnp.inf, jax.lax.max,
                                  (1, p, p, 1), (1, p, p, 1), "VALID")
    flat = jnp.transpose(x, (0, 3, 1, 2)).reshape(N, -1)
    h = jnp.tanh(jnp.maximum(jnp.dot(flat, params["fc1_w_eff"], precision=hp)
                             + params["fc1_b_eff"], 0.0)) * (math.pi / 2)
    F = quantum_features(h, L, n).reshape(N, L, 2 * D * D)
    q = jnp.einsum("blf,lif->bli", F, params["G"], precision=hp).reshape(N, L * n)
    return jnp.dot(q, params["fc2_w"], precision=hp) + params["fc2_b"]


# -----------------------------------------------------------------------------
if __name__ == "__main__":
    key = jax.random.PRNGKey(0)
    k_param, k_x = jax.random.split(key)
    cfg = dict(in_channels=4, num_classes=3, input_size=(4, 16, 16),
               conv_channels=[8, 16], conv_kernels=[3, 3], conv_strides=[1, 1],
               conv_paddings=[1, 1], pool_sizes=[2, 2],
               num_qubits=4, num_qlayers=2, num_qreps=2)
    params = build_model(k_param, **cfg)

    x = jax.random.normal(k_x, (2, 4, 16, 16), jnp.float32)   # NCHW like PyTorch

    fwd = jax.jit(lambda xx: hqnn_forward(xx, params))
    ref_fn = jax.jit(lambda xx: reference_forward(xx, params))

    out = jax.block_until_ready(fwd(x))
    ref = jax.block_until_ready(ref_fn(x))

    assert out.shape == (2, cfg["num_classes"])
    # bf16 MXU inputs on the conv stage + fused algebra vs f32 HIGHEST reference:
    # observed error is ~1e-2; 5e-2 tolerance retained from the original test.
    np.testing.assert_allclose(np.asarray(out), np.asarray(ref), rtol=5e-2, atol=5e-2)
    print("KERNEL_OK")
</pallas_src>

<mosaic_0001>
module attributes {stable_mosaic.version = 11 : i64} {
  func.func @_conv_pool_kernel(%arg0: i32, %arg1: memref<8x36xbf16, #tpu.memory_space<vmem>>, %arg2: memref<4x36x128xbf16, #tpu.memory_space<vmem>>, %arg3: memref<8x1xf32, #tpu.memory_space<vmem>>, %arg4: memref<8x128xf32, #tpu.memory_space<vmem>>) attributes {dimension_semantics = [#tpu.dimension_semantics<parallel>], iteration_bounds = array<i64: 1>, scalar_prefetch = 0 : i64, scratch_operands = 0 : i64, tpu.core_type = #tpu.core_type<tc>, window_params = [{pipeline_mode = #tpu.pipeline_mode<synchronous>, transform_indices = @transform_0, window_bounds = array<i64: 8, 36>}, {transform_indices = @transform_1, window_bounds = array<i64: 4, 36, 128>}, {pipeline_mode = #tpu.pipeline_mode<synchronous>, transform_indices = @transform_2, window_bounds = array<i64: 8, 1>}, {transform_indices = @transform_3, window_bounds = array<i64: 8, 128>}]} {
    %c0 = arith.constant 0 : index
    %c0_0 = arith.constant 0 : index
    %0 = vector.load %arg1[%c0, %c0_0] : memref<8x36xbf16, #tpu.memory_space<vmem>>, vector<8x36xbf16>
    %c0_1 = arith.constant 0 : index
    %c0_2 = arith.constant 0 : index
    %c0_3 = arith.constant 0 : index
    %1 = vector.load %arg2[%c0_1, %c0_2, %c0_3] : memref<4x36x128xbf16, #tpu.memory_space<vmem>>, vector<1x36x128xbf16>
    %2 = vector.shape_cast %1 : vector<1x36x128xbf16> to vector<36x128xbf16>
    %cst = arith.constant dense<0.000000e+00> : vector<8x128xf32>
    %3 = tpu.matmul %0, %2, %cst {dimension_numbers = #tpu.dot_dimension_numbers<[1], [0], [0], [1], [0, 0, 1, 1], [], []>} : vector<8x36xbf16>, vector<36x128xbf16>, vector<8x128xf32> -> vector<8x128xf32>
    %c0_4 = arith.constant 0 : index
    %c0_5 = arith.constant 0 : index
    %4 = vector.load %arg1[%c0_4, %c0_5] : memref<8x36xbf16, #tpu.memory_space<vmem>>, vector<8x36xbf16>
    %c1 = arith.constant 1 : index
    %c0_6 = arith.constant 0 : index
    %c0_7 = arith.constant 0 : index
    %5 = vector.load %arg2[%c1, %c0_6, %c0_7] : memref<4x36x128xbf16, #tpu.memory_space<vmem>>, vector<1x36x128xbf16>
    %6 = vector.shape_cast %5 : vector<1x36x128xbf16> to vector<36x128xbf16>
    %cst_8 = arith.constant dense<0.000000e+00> : vector<8x128xf32>
    %7 = tpu.matmul %4, %6, %cst_8 {dimension_numbers = #tpu.dot_dimension_numbers<[1], [0], [0], [1], [0, 0, 1, 1], [], []>} : vector<8x36xbf16>, vector<36x128xbf16>, vector<8x128xf32> -> vector<8x128xf32>
    %8 = arith.maximumf %3, %7 : vector<8x128xf32>
    %c0_9 = arith.constant 0 : index
    %c0_10 = arith.constant 0 : index
    %9 = vector.load %arg1[%c0_9, %c0_10] : memref<8x36xbf16, #tpu.memory_space<vmem>>, vector<8x36xbf16>
    %c2 = arith.constant 2 : index
    %c0_11 = arith.constant 0 : index
    %c0_12 = arith.constant 0 : index
    %10 = vector.load %arg2[%c2, %c0_11, %c0_12] : memref<4x36x128xbf16, #tpu.memory_space<vmem>>, vector<1x36x128xbf16>
    %11 = vector.shape_cast %10 : vector<1x36x128xbf16> to vector<36x128xbf16>
    %cst_13 = arith.constant dense<0.000000e+00> : vector<8x128xf32>
    %12 = tpu.matmul %9, %11, %cst_13 {dimension_numbers = #tpu.dot_dimension_numbers<[1], [0], [0], [1], [0, 0, 1, 1], [], []>} : vector<8x36xbf16>, vector<36x128xbf16>, vector<8x128xf32> -> vector<8x128xf32>
    %13 = arith.maximumf %8, %12 : vector<8x128xf32>
    %c0_14 = arith.constant 0 : index
    %c0_15 = arith.constant 0 : index
    %14 = vector.load %arg1[%c0_14, %c0_15] : memref<8x36xbf16, #tpu.memory_space<vmem>>, vector<8x36xbf16>
    %c3 = arith.constant 3 : index
    %c0_16 = arith.constant 0 : index
    %c0_17 = arith.constant 0 : index
    %15 = vector.load %arg2[%c3, %c0_16, %c0_17] : memref<4x36x128xbf16, #tpu.memory_space<vmem>>, vector<1x36x128xbf16>
    %16 = vector.shape_cast %15 : vector<1x36x128xbf16> to vector<36x128xbf16>
    %cst_18 = arith.constant dense<0.000000e+00> : vector<8x128xf32>
    %17 = tpu.matmul %14, %16, %cst_18 {dimension_numbers = #tpu.dot_dimension_numbers<[1], [0], [0], [1], [0, 0, 1, 1], [], []>} : vector<8x36xbf16>, vector<36x128xbf16>, vector<8x128xf32> -> vector<8x128xf32>
    %18 = arith.maximumf %13, %17 : vector<8x128xf32>
    %c0_19 = arith.constant 0 : index
    %c0_20 = arith.constant 0 : index
    %19 = vector.load %arg3[%c0_19, %c0_20] : memref<8x1xf32, #tpu.memory_space<vmem>>, vector<8x1xf32>
    %20 = vector.broadcast %19 : vector<8x1xf32> to vector<8x128xf32>
    %21 = arith.addf %18, %20 : vector<8x128xf32>
    %cst_21 = arith.constant 0.000000e+00 : f32
    %22 = vector.broadcast %cst_21 : f32 to vector<8x128xf32>
    %23 = arith.maximumf %21, %22 : vector<8x128xf32>
    %c0_22 = arith.constant 0 : index
    %c0_23 = arith.constant 0 : index
    %24 = vector.load %arg4[%c0_22, %c0_23] : memref<8x128xf32, #tpu.memory_space<vmem>>, vector<8x128xf32>
    tpu.vector_store %arg4[%c0_22, %c0_23], %23 {strides = array<i32>} : memref<8x128xf32, #tpu.memory_space<vmem>>, vector<8x128xf32>,
    return
  }
  func.func @transform_0(%arg0: i32) -> (i32, i32) {
    %c0_i32 = arith.constant 0 : i32
    %c0_i32_0 = arith.constant 0 : i32
    %c0_i32_1 = arith.constant 0 : i32
    return %c0_i32, %c0_i32_0 : i32, i32
  }
  func.func @transform_1(%arg0: i32) -> (i32, i32, i32) {
    %c0_i32 = arith.constant 0 : i32
    %c0_i32_0 = arith.constant 0 : i32
    %c0_i32_1 = arith.constant 0 : i32
    return %c0_i32, %c0_i32_0, %arg0 : i32, i32, i32
  }
  func.func @transform_2(%arg0: i32) -> (i32, i32) {
    %c0_i32 = arith.constant 0 : i32
    %c0_i32_0 = arith.constant 0 : i32
    %c0_i32_1 = arith.constant 0 : i32
    return %c0_i32, %c0_i32_0 : i32, i32
  }
  func.func @transform_3(%arg0: i32) -> (i32, i32) {
    %c0_i32 = arith.constant 0 : i32
    %c0_i32_0 = arith.constant 0 : i32
    return %c0_i32, %arg0 : i32, i32
  }
}

module attributes {stable_mosaic.version = 11 : i64} {
  func.func @_conv_pool_kernel(%arg0: i32, %arg1: memref<16x72xbf16, #tpu.memory_space<vmem>>, %arg2: memref<4x72x128xbf16, #tpu.memory_space<vmem>>, %arg3: memref<16x1xf32, #tpu.memory_space<vmem>>, %arg4: memref<16x128xf32, #tpu.memory_space<vmem>>) attributes {dimension_semantics = [#tpu.dimension_semantics<parallel>], iteration_bounds = array<i64: 1>, scalar_prefetch = 0 : i64, scratch_operands = 0 : i64, tpu.core_type = #tpu.core_type<tc>, window_params = [{pipeline_mode = #tpu.pipeline_mode<synchronous>, transform_indices = @transform_0, window_bounds = array<i64: 16, 72>}, {transform_indices = @transform_1, window_bounds = array<i64: 4, 72, 128>}, {pipeline_mode = #tpu.pipeline_mode<synchronous>, transform_indices = @transform_2, window_bounds = array<i64: 16, 1>}, {transform_indices = @transform_3, window_bounds = array<i64: 16, 128>}]} {
    %c0 = arith.constant 0 : index
    %c0_0 = arith.constant 0 : index
    %0 = vector.load %arg1[%c0, %c0_0] : memref<16x72xbf16, #tpu.memory_space<vmem>>, vector<16x72xbf16>
    %c0_1 = arith.constant 0 : index
    %c0_2 = arith.constant 0 : index
    %c0_3 = arith.constant 0 : index
    %1 = vector.load %arg2[%c0_1, %c0_2, %c0_3] : memref<4x72x128xbf16, #tpu.memory_space<vmem>>, vector<1x72x128xbf16>
    %2 = vector.shape_cast %1 : vector<1x72x128xbf16> to vector<72x128xbf16>
    %cst = arith.constant dense<0.000000e+00> : vector<16x128xf32>
    %3 = tpu.matmul %0, %2, %cst {dimension_numbers = #tpu.dot_dimension_numbers<[1], [0], [0], [1], [0, 0, 1, 1], [], []>} : vector<16x72xbf16>, vector<72x128xbf16>, vector<16x128xf32> -> vector<16x128xf32>
    %c0_4 = arith.constant 0 : index
    %c0_5 = arith.constant 0 : index
    %4 = vector.load %arg1[%c0_4, %c0_5] : memref<16x72xbf16, #tpu.memory_space<vmem>>, vector<16x72xbf16>
    %c1 = arith.constant 1 : index
    %c0_6 = arith.constant 0 : index
    %c0_7 = arith.constant 0 : index
    %5 = vector.load %arg2[%c1, %c0_6, %c0_7] : memref<4x72x128xbf16, #tpu.memory_space<vmem>>, vector<1x72x128xbf16>
    %6 = vector.shape_cast %5 : vector<1x72x128xbf16> to vector<72x128xbf16>
    %cst_8 = arith.constant dense<0.000000e+00> : vector<16x128xf32>
    %7 = tpu.matmul %4, %6, %cst_8 {dimension_numbers = #tpu.dot_dimension_numbers<[1], [0], [0], [1], [0, 0, 1, 1], [], []>} : vector<16x72xbf16>, vector<72x128xbf16>, vector<16x128xf32> -> vector<16x128xf32>
    %8 = arith.maximumf %3, %7 : vector<16x128xf32>
    %c0_9 = arith.constant 0 : index
    %c0_10 = arith.constant 0 : index
    %9 = vector.load %arg1[%c0_9, %c0_10] : memref<16x72xbf16, #tpu.memory_space<vmem>>, vector<16x72xbf16>
    %c2 = arith.constant 2 : index
    %c0_11 = arith.constant 0 : index
    %c0_12 = arith.constant 0 : index
    %10 = vector.load %arg2[%c2, %c0_11, %c0_12] : memref<4x72x128xbf16, #tpu.memory_space<vmem>>, vector<1x72x128xbf16>
    %11 = vector.shape_cast %10 : vector<1x72x128xbf16> to vector<72x128xbf16>
    %cst_13 = arith.constant dense<0.000000e+00> : vector<16x128xf32>
    %12 = tpu.matmul %9, %11, %cst_13 {dimension_numbers = #tpu.dot_dimension_numbers<[1], [0], [0], [1], [0, 0, 1, 1], [], []>} : vector<16x72xbf16>, vector<72x128xbf16>, vector<16x128xf32> -> vector<16x128xf32>
    %13 = arith.maximumf %8, %12 : vector<16x128xf32>
    %c0_14 = arith.constant 0 : index
    %c0_15 = arith.constant 0 : index
    %14 = vector.load %arg1[%c0_14, %c0_15] : memref<16x72xbf16, #tpu.memory_space<vmem>>, vector<16x72xbf16>
    %c3 = arith.constant 3 : index
    %c0_16 = arith.constant 0 : index
    %c0_17 = arith.constant 0 : index
    %15 = vector.load %arg2[%c3, %c0_16, %c0_17] : memref<4x72x128xbf16, #tpu.memory_space<vmem>>, vector<1x72x128xbf16>
    %16 = vector.shape_cast %15 : vector<1x72x128xbf16> to vector<72x128xbf16>
    %cst_18 = arith.constant dense<0.000000e+00> : vector<16x128xf32>
    %17 = tpu.matmul %14, %16, %cst_18 {dimension_numbers = #tpu.dot_dimension_numbers<[1], [0], [0], [1], [0, 0, 1, 1], [], []>} : vector<16x72xbf16>, vector<72x128xbf16>, vector<16x128xf32> -> vector<16x128xf32>
    %18 = arith.maximumf %13, %17 : vector<16x128xf32>
    %c0_19 = arith.constant 0 : index
    %c0_20 = arith.constant 0 : index
    %19 = vector.load %arg3[%c0_19, %c0_20] : memref<16x1xf32, #tpu.memory_space<vmem>>, vector<16x1xf32>
    %20 = vector.broadcast %19 : vector<16x1xf32> to vector<16x128xf32>
    %21 = arith.addf %18, %20 : vector<16x128xf32>
    %cst_21 = arith.constant 0.000000e+00 : f32
    %22 = vector.broadcast %cst_21 : f32 to vector<16x128xf32>
    %23 = arith.maximumf %21, %22 : vector<16x128xf32>
    %c0_22 = arith.constant 0 : index
    %c0_23 = arith.constant 0 : index
    %24 = vector.load %arg4[%c0_22, %c0_23] : memref<16x128xf32, #tpu.memory_space<vmem>>, vector<16x128xf32>
    tpu.vector_store %arg4[%c0_22, %c0_23], %23 {strides = array<i32>} : memref<16x128xf32, #tpu.memory_space<vmem>>, vector<16x128xf32>,
    return
  }
  func.func @transform_0(%arg0: i32) -> (i32, i32) {
    %c0_i32 = arith.constant 0 : i32
    %c0_i32_0 = arith.constant 0 : i32
    %c0_i32_1 = arith.constant 0 : i32
    return %c0_i32, %c0_i32_0 : i32, i32
  }
  func.func @transform_1(%arg0: i32) -> (i32, i32, i32) {
    %c0_i32 = arith.constant 0 : i32
    %c0_i32_0 = arith.constant 0 : i32
    %c0_i32_1 = arith.constant 0 : i32
    return %c0_i32, %c0_i32_0, %arg0 : i32, i32, i32
  }
  func.func @transform_2(%arg0: i32) -> (i32, i32) {
    %c0_i32 = arith.constant 0 : i32
    %c0_i32_0 = arith.constant 0 : i32
    %c0_i32_1 = arith.constant 0 : i32
    return %c0_i32, %c0_i32_0 : i32, i32
  }
  func.func @transform_3(%arg0: i32) -> (i32, i32) {
    %c0_i32 = arith.constant 0 : i32
    %c0_i32_0 = arith.constant 0 : i32
    return %c0_i32, %arg0 : i32, i32
  }
}

module attributes {stable_mosaic.version = 11 : i64} {
  func.func @_matmul_bias_act_kernel(%arg0: i32, %arg1: memref<8x256xf32, #tpu.memory_space<vmem>>, %arg2: memref<256x8xf32, #tpu.memory_space<vmem>>, %arg3: memref<1x8xf32, #tpu.memory_space<vmem>>, %arg4: memref<8x8xf32, #tpu.memory_space<vmem>>) attributes {dimension_semantics = [#tpu.dimension_semantics<parallel>], iteration_bounds = array<i64: 1>, scalar_prefetch = 0 : i64, scratch_operands = 0 : i64, tpu.core_type = #tpu.core_type<tc>, window_params = [{transform_indices = @transform_0, window_bounds = array<i64: 8, 256>}, {pipeline_mode = #tpu.pipeline_mode<synchronous>, transform_indices = @transform_1, window_bounds = array<i64: 256, 8>}, {pipeline_mode = #tpu.pipeline_mode<synchronous>, transform_indices = @transform_2, window_bounds = array<i64: 1, 8>}, {transform_indices = @transform_3, window_bounds = array<i64: 8, 8>}]} {
    %c0 = arith.constant 0 : index
    %c0_0 = arith.constant 0 : index
    %0 = vector.load %arg1[%c0, %c0_0] : memref<8x256xf32, #tpu.memory_space<vmem>>, vector<8x256xf32>
    %c0_1 = arith.constant 0 : index
    %c0_2 = arith.constant 0 : index
    %1 = vector.load %arg2[%c0_1, %c0_2] : memref<256x8xf32, #tpu.memory_space<vmem>>, vector<256x8xf32>
    %cst = arith.constant dense<0.000000e+00> : vector<8x8xf32>
    %2 = tpu.matmul %0, %1, %cst {dimension_numbers = #tpu.dot_dimension_numbers<[1], [0], [0], [1], [0, 0, 1, 1], [], []>} : vector<8x256xf32>, vector<256x8xf32>, vector<8x8xf32> -> vector<8x8xf32>
    %c0_3 = arith.constant 0 : index
    %c0_4 = arith.constant 0 : index
    %3 = vector.load %arg3[%c0_3, %c0_4] : memref<1x8xf32, #tpu.memory_space<vmem>>, vector<1x8xf32>
    %4 = vector.broadcast %3 : vector<1x8xf32> to vector<8x8xf32>
    %5 = arith.addf %2, %4 : vector<8x8xf32>
    %cst_5 = arith.constant 0.000000e+00 : f32
    %6 = vector.broadcast %cst_5 : f32 to vector<8x8xf32>
    %7 = arith.maximumf %5, %6 : vector<8x8xf32>
    %8 = math.tanh %7 : vector<8x8xf32>
    %cst_6 = arith.constant 1.57079637 : f32
    %9 = vector.broadcast %cst_6 : f32 to vector<8x8xf32>
    %10 = arith.mulf %8, %9 : vector<8x8xf32>
    %c0_7 = arith.constant 0 : index
    %c0_8 = arith.constant 0 : index
    %11 = vector.load %arg4[%c0_7, %c0_8] : memref<8x8xf32, #tpu.memory_space<vmem>>, vector<8x8xf32>
    tpu.vector_store %arg4[%c0_7, %c0_8], %10 {strides = array<i32>} : memref<8x8xf32, #tpu.memory_space<vmem>>, vector<8x8xf32>,
    return
  }
  func.func @transform_0(%arg0: i32) -> (i32, i32) {
    %c0_i32 = arith.constant 0 : i32
    %c0_i32_0 = arith.constant 0 : i32
    return %arg0, %c0_i32 : i32, i32
  }
  func.func @transform_1(%arg0: i32) -> (i32, i32) {
    %c0_i32 = arith.constant 0 : i32
    %c0_i32_0 = arith.constant 0 : i32
    %c0_i32_1 = arith.constant 0 : i32
    return %c0_i32, %c0_i32_0 : i32, i32
  }
  func.func @transform_2(%arg0: i32) -> (i32, i32) {
    %c0_i32 = arith.constant 0 : i32
    %c0_i32_0 = arith.constant 0 : i32
    %c0_i32_1 = arith.constant 0 : i32
    return %c0_i32, %c0_i32_0 : i32, i32
  }
  func.func @transform_3(%arg0: i32) -> (i32, i32) {
    %c0_i32 = arith.constant 0 : i32
    %c0_i32_0 = arith.constant 0 : i32
    return %arg0, %c0_i32 : i32, i32
  }
}

module attributes {stable_mosaic.version = 11 : i64} {
  func.func @_matmul_bias_act_kernel(%arg0: i32, %arg1: memref<8x1024xf32, #tpu.memory_space<vmem>>, %arg2: memref<1024x3xf32, #tpu.memory_space<vmem>>, %arg3: memref<1x3xf32, #tpu.memory_space<vmem>>, %arg4: memref<8x3xf32, #tpu.memory_space<vmem>>) attributes {dimension_semantics = [#tpu.dimension_semantics<parallel>], iteration_bounds = array<i64: 1>, scalar_prefetch = 0 : i64, scratch_operands = 0 : i64, tpu.core_type = #tpu.core_type<tc>, window_params = [{transform_indices = @transform_0, window_bounds = array<i64: 8, 1024>}, {pipeline_mode = #tpu.pipeline_mode<synchronous>, transform_indices = @transform_1, window_bounds = array<i64: 1024, 3>}, {pipeline_mode = #tpu.pipeline_mode<synchronous>, transform_indices = @transform_2, window_bounds = array<i64: 1, 3>}, {transform_indices = @transform_3, window_bounds = array<i64: 8, 3>}]} {
    %c0 = arith.constant 0 : index
    %c0_0 = arith.constant 0 : index
    %0 = vector.load %arg1[%c0, %c0_0] : memref<8x1024xf32, #tpu.memory_space<vmem>>, vector<8x1024xf32>
    %c0_1 = arith.constant 0 : index
    %c0_2 = arith.constant 0 : index
    %1 = vector.load %arg2[%c0_1, %c0_2] : memref<1024x3xf32, #tpu.memory_space<vmem>>, vector<1024x3xf32>
    %cst = arith.constant dense<0.000000e+00> : vector<8x3xf32>
    %2 = tpu.matmul %0, %1, %cst {dimension_numbers = #tpu.dot_dimension_numbers<[1], [0], [0], [1], [0, 0, 1, 1], [], []>} : vector<8x1024xf32>, vector<1024x3xf32>, vector<8x3xf32> -> vector<8x3xf32>
    %c0_3 = arith.constant 0 : index
    %c0_4 = arith.constant 0 : index
    %3 = vector.load %arg3[%c0_3, %c0_4] : memref<1x3xf32, #tpu.memory_space<vmem>>, vector<1x3xf32>
    %4 = vector.broadcast %3 : vector<1x3xf32> to vector<8x3xf32>
    %5 = arith.addf %2, %4 : vector<8x3xf32>
    %c0_5 = arith.constant 0 : index
    %c0_6 = arith.constant 0 : index
    %6 = vector.load %arg4[%c0_5, %c0_6] : memref<8x3xf32, #tpu.memory_space<vmem>>, vector<8x3xf32>
    tpu.vector_store %arg4[%c0_5, %c0_6], %5 {strides = array<i32>} : memref<8x3xf32, #tpu.memory_space<vmem>>, vector<8x3xf32>,
    return
  }
  func.func @transform_0(%arg0: i32) -> (i32, i32) {
    %c0_i32 = arith.constant 0 : i32
    %c0_i32_0 = arith.constant 0 : i32
    return %arg0, %c0_i32 : i32, i32
  }
  func.func @transform_1(%arg0: i32) -> (i32, i32) {
    %c0_i32 = arith.constant 0 : i32
    %c0_i32_0 = arith.constant 0 : i32
    %c0_i32_1 = arith.constant 0 : i32
    return %c0_i32, %c0_i32_0 : i32, i32
  }
  func.func @transform_2(%arg0: i32) -> (i32, i32) {
    %c0_i32 = arith.constant 0 : i32
    %c0_i32_0 = arith.constant 0 : i32
    %c0_i32_1 = arith.constant 0 : i32
    return %c0_i32, %c0_i32_0 : i32, i32
  }
  func.func @transform_3(%arg0: i32) -> (i32, i32) {
    %c0_i32 = arith.constant 0 : i32
    %c0_i32_0 = arith.constant 0 : i32
    return %arg0, %c0_i32 : i32, i32
  }
}

</mosaic_0001>

<llo_original>
// kernel: _lambda_.4
$region0: #{_lambda_.4}
  #allocation0 [shape = 'u32[]', space=smem, size = 0x4, offset = 0x4, fixed_abs, tag = 'smem constant byte address 0x4 - core index']
  #allocation1 [shape = 'u32[72,128]{1,0:T(1,128)}', space=vmem, size = 0x9000, scoped, tag = 'internal scratch']
  %s0 = inlined_call_operand.vmem [shape: bf16[8,36], index: 0, kind: input, shape index: {}]
  %s1 = inlined_call_operand.vmem [shape: bf16[4,36,128], index: 1, kind: input, shape index: {}]
  %s2 = inlined_call_operand.vmem [shape: f32[8,1], index: 2, kind: input, shape index: {}]
  %s3 = inlined_call_operand.vmem [shape: f32[8,128], index: 3, kind: output, shape index: {}]
  %s4 = sld [smem:[#allocation0]]
  $region22: #{_lambda_.4} parent=0
    _
  %s6 = ssub.s32 1, %s4
  %s7 = scalar_select 0, %s6, %s4
  // Predicated region
  $region2: #{_lambda_.4} parent=0 // pred_check
    _
  $region3: #{_lambda_.4} parent=0 // pred_check_branch
    %9 = sbr.rel (0) target = $region5
  $region4: #{_lambda_.4} parent=0 // pred_region
    _
  $region5: #{_lambda_.4} parent=0 // pred_fallthru
    _
  // Predicated region
  $region6: #{_lambda_.4} parent=0 // pred_check
    _
  $region7: #{_lambda_.4} parent=0 // pred_check_branch
    %11 = sbr.rel (0) target = $region9
  $region8: #{_lambda_.4} parent=0 // pred_region
    _
  $region9: #{_lambda_.4} parent=0 // pred_fallthru
    _
  // Predicated region
  $region10: #{_lambda_.4} parent=0 // pred_check
    _
  $region11: #{_lambda_.4} parent=0 // pred_check_branch
    %13 = sbr.rel (0) target = $region13
  $region12: #{_lambda_.4} parent=0 // pred_region
    _
  $region13: #{_lambda_.4} parent=0 // pred_fallthru
    _
  %v15 = vld [vmem:[%s0] sm:$0xf]
  %v16 = vld [vmem:[%s1] sm:$0xf]
  %v17 = vld [vmem:[%s1 + $0x4] sm:$0xf]
  %v18 = vld [vmem:[%s1 + $0x8] sm:$0xf]
  %v19 = vld [vmem:[%s1 + $0xc] sm:$0xf]
  %v20 = vld [vmem:[%s1 + $0x10] sm:$0x3]
  %v26 = vunpack.c.l.b16 %v16
  %v27 = vunpack.c.l.b16 %v17
  %v28 = vunpack.c.l.b16 %v18
  %v29 = vunpack.c.l.b16 %v19
  %v30 = vunpack.c.l.b16 %v20
  %v31 = vpack.c.b16 %v27, %v26
  %v32 = vpack.c.b16 %v29, %v28
  %v33 = vpack.c.b16 %v30, %v30
  %vm36 = vcmask 293888
  %v38 = vsel %vm36, %v15, 0
  %vm40 = vcmask 1041408
  %v42 = vsel %vm40, %v33, 0
  %44 = vmatpush.bf16.msra.mxu0 0
  %45 = vmatpush.bf16.msra.mxu0 0
  %46 = vmatpush.bf16.msra.mxu0 0
  %47 = vmatpush.bf16.msra.mxu0 0
  %48 = vmatpush.bf16.msra.mxu0 0
  %49 = vmatpush.bf16.msra.mxu0 %v42
  %50 = vmatpush.bf16.msra.mxu0 %v32
  %51 = vmatpush.bf16.msra.mxu0 %v31
  %52 = vmatmul.bf16.gmra.mxu0 %v38
  %v53 = vpop.f32.mrf.mxu0
  %v54 = vadd.f32 0.0, %v53
  %v55 = vpop.f32.mrf.mxu0
  %56 = vdwg.mxu0
  %s57 = scalar_lea.vmem %s1, 20
  %v58 = vld [vmem:[%s57] sm:$0xf]
  %v59 = vld [vmem:[%s57 + $0x4] sm:$0xf]
  %v60 = vld [vmem:[%s57 + $0x8] sm:$0xf]
  %v61 = vld [vmem:[%s57 + $0xc] sm:$0xf]
  %v62 = vld [vmem:[%s57 + $0x10] sm:$0x3]
  %v68 = vunpack.c.l.b16 %v58
  %v69 = vunpack.c.l.b16 %v59
  %v70 = vunpack.c.l.b16 %v60
  %v71 = vunpack.c.l.b16 %v61
  %v72 = vunpack.c.l.b16 %v62
  %v73 = vpack.c.b16 %v69, %v68
  %v74 = vpack.c.b16 %v71, %v70
  %v75 = vpack.c.b16 %v72, %v72
  %v79 = vsel %vm40, %v75, 0
  %81 = vmatpush.bf16.msra.mxu0 0
  %82 = vmatpush.bf16.msra.mxu0 0
  %83 = vmatpush.bf16.msra.mxu0 0
  %84 = vmatpush.bf16.msra.mxu0 0
  %85 = vmatpush.bf16.msra.mxu0 0
  %86 = vmatpush.bf16.msra.mxu0 %v79
  %87 = vmatpush.bf16.msra.mxu0 %v74
  %88 = vmatpush.bf16.msra.mxu0 %v73
  %89 = vmatmul.bf16.gmra.mxu0 %v38
  %v90 = vpop.f32.mrf.mxu0
  %v91 = vadd.f32 0.0, %v90
  %v92 = vpop.f32.mrf.mxu0
  %93 = vdwg.mxu0
  %v94 = vmax.f32 %v54, %v91
  %s95 = scalar_lea.vmem %s1, 40
  %v96 = vld [vmem:[%s95] sm:$0xf]
  %v97 = vld [vmem:[%s95 + $0x4] sm:$0xf]
  %v98 = vld [vmem:[%s95 + $0x8] sm:$0xf]
  %v99 = vld [vmem:[%s95 + $0xc] sm:$0xf]
  %v100 = vld [vmem:[%s95 + $0x10] sm:$0x3]
  %v106 = vunpack.c.l.b16 %v96
  %v107 = vunpack.c.l.b16 %v97
  %v108 = vunpack.c.l.b16 %v98
  %v109 = vunpack.c.l.b16 %v99
  %v110 = vunpack.c.l.b16 %v100
  %v111 = vpack.c.b16 %v107, %v106
  %v112 = vpack.c.b16 %v109, %v108
  %v113 = vpack.c.b16 %v110, %v110
  %v117 = vsel %vm40, %v113, 0
  %119 = vmatpush.bf16.msra.mxu0 0
  %120 = vmatpush.bf16.msra.mxu0 0
  %121 = vmatpush.bf16.msra.mxu0 0
  %122 = vmatpush.bf16.msra.mxu0 0
  %123 = vmatpush.bf16.msra.mxu0 0
  %124 = vmatpush.bf16.msra.mxu0 %v117
  %125 = vmatpush.bf16.msra.mxu0 %v112
  %126 = vmatpush.bf16.msra.mxu0 %v111
  %127 = vmatmul.bf16.gmra.mxu0 %v38
  %v128 = vpop.f32.mrf.mxu0
  %v129 = vadd.f32 0.0, %v128
  %v130 = vpop.f32.mrf.mxu0
  %131 = vdwg.mxu0
  %v132 = vmax.f32 %v94, %v129
  %s133 = scalar_lea.vmem %s1, 60
  %v134 = vld [vmem:[%s133] sm:$0xf]
  %v135 = vld [vmem:[%s133 + $0x4] sm:$0xf]
  %v136 = vld [vmem:[%s133 + $0x8] sm:$0xf]
  %v137 = vld [vmem:[%s133 + $0xc] sm:$0xf]
  %v138 = vld [vmem:[%s133 + $0x10] sm:$0x3]
  %v144 = vunpack.c.l.b16 %v134
  %v145 = vunpack.c.l.b16 %v135
  %v146 = vunpack.c.l.b16 %v136
  %v147 = vunpack.c.l.b16 %v137
  %v148 = vunpack.c.l.b16 %v138
  %v149 = vpack.c.b16 %v145, %v144
  %v150 = vpack.c.b16 %v147, %v146
  %v151 = vpack.c.b16 %v148, %v148
  %v155 = vsel %vm40, %v151, 0
  %157 = vmatpush.bf16.msra.mxu0 0
  %158 = vmatpush.bf16.msra.mxu0 0
  %159 = vmatpush.bf16.msra.mxu0 0
  %160 = vmatpush.bf16.msra.mxu0 0
  %161 = vmatpush.bf16.msra.mxu0 0
  %162 = vmatpush.bf16.msra.mxu0 %v155
  %163 = vmatpush.bf16.msra.mxu0 %v150
  %164 = vmatpush.bf16.msra.mxu0 %v149
  %165 = vmatmul.bf16.gmra.mxu0 %v38
  %v166 = vpop.f32.mrf.mxu0
  %v167 = vadd.f32 0.0, %v166
  %v168 = vpop.f32.mrf.mxu0
  %169 = vdwg.mxu0
  %v170 = vmax.f32 %v132, %v167
  %v171 = vld [vmem:[%s2] sm:$0xff]
  %173 = vset.pattern.permute.xlu0 0
  %174 = vperm.xlu0 %173, %v171
  %v175 = vpop.permute.xlu0 %174
  %v177 = vadd.f32 %v170, %v175
  %v178 = vmax.f32 %v177, 0.0
  %179 = vst [vmem:[%s3] sm:$0xff] %v178
  // Predicated region
  $region14: #{_lambda_.4} parent=0 // pred_check
    _
  $region15: #{_lambda_.4} parent=0 // pred_check_branch
    %181 = sbr.rel (0) target = $region17
  $region16: #{_lambda_.4} parent=0 // pred_region
    _
  $region17: #{_lambda_.4} parent=0 // pred_fallthru
    _
  // Predicated region
  $region18: #{_lambda_.4} parent=0 // pred_check
    _
  $region19: #{_lambda_.4} parent=0 // pred_check_branch
    %183 = sbr.rel (0) target = $region21
  $region20: #{_lambda_.4} parent=0 // pred_region
    _
  $region21: #{_lambda_.4} parent=0 // pred_fallthru
    _

// kernel: _lambda_.5
$region0: #{_lambda_.5}
  #allocation0 [shape = 'u32[]', space=smem, size = 0x4, offset = 0x4, fixed_abs, tag = 'smem constant byte address 0x4 - core index']
  #allocation1 [shape = 'u32[72,128]{1,0:T(1,128)}', space=vmem, size = 0x9000, scoped, tag = 'internal scratch']
  %s0 = inlined_call_operand.vmem [shape: bf16[16,72], index: 0, kind: input, shape index: {}]
  %s1 = inlined_call_operand.vmem [shape: bf16[4,72,128], index: 1, kind: input, shape index: {}]
  %s2 = inlined_call_operand.vmem [shape: f32[16,1], index: 2, kind: input, shape index: {}]
  %s3 = inlined_call_operand.vmem [shape: f32[16,128], index: 3, kind: output, shape index: {}]
  %s4 = sld [smem:[#allocation0]]
  $region22: #{_lambda_.5} parent=0
    _
  %s6 = ssub.s32 1, %s4
  %s7 = scalar_select 0, %s6, %s4
  // Predicated region
  $region2: #{_lambda_.5} parent=0 // pred_check
    _
  $region3: #{_lambda_.5} parent=0 // pred_check_branch
    %9 = sbr.rel (0) target = $region5
  $region4: #{_lambda_.5} parent=0 // pred_region
    _
  $region5: #{_lambda_.5} parent=0 // pred_fallthru
    _
  // Predicated region
  $region6: #{_lambda_.5} parent=0 // pred_check
    _
  $region7: #{_lambda_.5} parent=0 // pred_check_branch
    %11 = sbr.rel (0) target = $region9
  $region8: #{_lambda_.5} parent=0 // pred_region
    _
  $region9: #{_lambda_.5} parent=0 // pred_fallthru
    _
  // Predicated region
  $region10: #{_lambda_.5} parent=0 // pred_check
    _
  $region11: #{_lambda_.5} parent=0 // pred_check_branch
    %13 = sbr.rel (0) target = $region13
  $region12: #{_lambda_.5} parent=0 // pred_region
    _
  $region13: #{_lambda_.5} parent=0 // pred_fallthru
    _
  %v15 = vld [vmem:[%s0] sm:$0xf]
  %v16 = vld [vmem:[%s0 + $0x4] sm:$0xf]
  %v17 = vld [vmem:[%s1] sm:$0xf]
  %v18 = vld [vmem:[%s1 + $0x4] sm:$0xf]
  %v19 = vld [vmem:[%s1 + $0x8] sm:$0xf]
  %v20 = vld [vmem:[%s1 + $0xc] sm:$0xf]
  %v21 = vld [vmem:[%s1 + $0x10] sm:$0xf]
  %v22 = vld [vmem:[%s1 + $0x14] sm:$0xf]
  %v23 = vld [vmem:[%s1 + $0x18] sm:$0xf]
  %v24 = vld [vmem:[%s1 + $0x1c] sm:$0xf]
  %v25 = vld [vmem:[%s1 + $0x20] sm:$0xf]
  %v28 = vunpack.c.l.b16 %v15
  %v29 = vunpack.c.l.b16 %v16
  %v30 = vpack.c.b16 %v29, %v28
  %v40 = vunpack.c.l.b16 %v17
  %v41 = vunpack.c.l.b16 %v18
  %v42 = vunpack.c.l.b16 %v19
  %v43 = vunpack.c.l.b16 %v20
  %v44 = vunpack.c.l.b16 %v21
  %v45 = vunpack.c.l.b16 %v22
  %v46 = vunpack.c.l.b16 %v23
  %v47 = vunpack.c.l.b16 %v24
  %v48 = vunpack.c.l.b16 %v25
  %v49 = vpack.c.b16 %v41, %v40
  %v50 = vpack.c.b16 %v43, %v42
  %v51 = vpack.c.b16 %v45, %v44
  %v52 = vpack.c.b16 %v47, %v46
  %v53 = vpack.c.b16 %v48, %v48
  %vm58 = vcmask 588800
  %v60 = vsel %vm58, %v30, 0
  %vm62 = vcmask 1043456
  %v64 = vsel %vm62, %v53, 0
  %66 = vmatpush.bf16.msra.mxu0 0
  %67 = vmatpush.bf16.msra.mxu0 0
  %68 = vmatpush.bf16.msra.mxu0 0
  %69 = vmatpush.bf16.msra.mxu0 %v64
  %70 = vmatpush.bf16.msra.mxu0 %v52
  %71 = vmatpush.bf16.msra.mxu0 %v51
  %72 = vmatpush.bf16.msra.mxu0 %v50
  %73 = vmatpush.bf16.msra.mxu0 %v49
  %74 = vmatmul.bf16.gmra.mxu0 %v60
  %v75 = vpop.f32.mrf.mxu0
  %v76 = vadd.f32 0.0, %v75
  %v77 = vpop.f32.mrf.mxu0
  %v78 = vadd.f32 0.0, %v77
  %79 = vdwg.mxu0
  %s80 = scalar_lea.vmem %s1, 36
  %v81 = vld [vmem:[%s80] sm:$0xf]
  %v82 = vld [vmem:[%s80 + $0x4] sm:$0xf]
  %v83 = vld [vmem:[%s80 + $0x8] sm:$0xf]
  %v84 = vld [vmem:[%s80 + $0xc] sm:$0xf]
  %v85 = vld [vmem:[%s80 + $0x10] sm:$0xf]
  %v86 = vld [vmem:[%s80 + $0x14] sm:$0xf]
  %v87 = vld [vmem:[%s80 + $0x18] sm:$0xf]
  %v88 = vld [vmem:[%s80 + $0x1c] sm:$0xf]
  %v89 = vld [vmem:[%s80 + $0x20] sm:$0xf]
  %v99 = vunpack.c.l.b16 %v81
  %v100 = vunpack.c.l.b16 %v82
  %v101 = vunpack.c.l.b16 %v83
  %v102 = vunpack.c.l.b16 %v84
  %v103 = vunpack.c.l.b16 %v85
  %v104 = vunpack.c.l.b16 %v86
  %v105 = vunpack.c.l.b16 %v87
  %v106 = vunpack.c.l.b16 %v88
  %v107 = vunpack.c.l.b16 %v89
  %v108 = vpack.c.b16 %v100, %v99
  %v109 = vpack.c.b16 %v102, %v101
  %v110 = vpack.c.b16 %v104, %v103
  %v111 = vpack.c.b16 %v106, %v105
  %v112 = vpack.c.b16 %v107, %v107
  %v118 = vsel %vm62, %v112, 0
  %120 = vmatpush.bf16.msra.mxu0 0
  %121 = vmatpush.bf16.msra.mxu0 0
  %122 = vmatpush.bf16.msra.mxu0 0
  %123 = vmatpush.bf16.msra.mxu0 %v118
  %124 = vmatpush.bf16.msra.mxu0 %v111
  %125 = vmatpush.bf16.msra.mxu0 %v110
  %126 = vmatpush.bf16.msra.mxu0 %v109
  %127 = vmatpush.bf16.msra.mxu0 %v108
  %128 = vmatmul.bf16.gmra.mxu0 %v60
  %v129 = vpop.f32.mrf.mxu0
  %v130 = vadd.f32 0.0, %v129
  %v131 = vpop.f32.mrf.mxu0
  %v132 = vadd.f32 0.0, %v131
  %133 = vdwg.mxu0
  %v134 = vmax.f32 %v76, %v130
  %v135 = vmax.f32 %v78, %v132
  %s136 = scalar_lea.vmem %s1, 72
  %v137 = vld [vmem:[%s136] sm:$0xf]
  %v138 = vld [vmem:[%s136 + $0x4] sm:$0xf]
  %v139 = vld [vmem:[%s136 + $0x8] sm:$0xf]
  %v140 = vld [vmem:[%s136 + $0xc] sm:$0xf]
  %v141 = vld [vmem:[%s136 + $0x10] sm:$0xf]
  %v142 = vld [vmem:[%s136 + $0x14] sm:$0xf]
  %v143 = vld [vmem:[%s136 + $0x18] sm:$0xf]
  %v144 = vld [vmem:[%s136 + $0x1c] sm:$0xf]
  %v145 = vld [vmem:[%s136 + $0x20] sm:$0xf]
  %v155 = vunpack.c.l.b16 %v137
  %v156 = vunpack.c.l.b16 %v138
  %v157 = vunpack.c.l.b16 %v139
  %v158 = vunpack.c.l.b16 %v140
  %v159 = vunpack.c.l.b16 %v141
  %v160 = vunpack.c.l.b16 %v142
  %v161 = vunpack.c.l.b16 %v143
  %v162 = vunpack.c.l.b16 %v144
  %v163 = vunpack.c.l.b16 %v145
  %v164 = vpack.c.b16 %v156, %v155
  %v165 = vpack.c.b16 %v158, %v157
  %v166 = vpack.c.b16 %v160, %v159
  %v167 = vpack.c.b16 %v162, %v161
  %v168 = vpack.c.b16 %v163, %v163
  %v174 = vsel %vm62, %v168, 0
  %176 = vmatpush.bf16.msra.mxu0 0
  %177 = vmatpush.bf16.msra.mxu0 0
  %178 = vmatpush.bf16.msra.mxu0 0
  %179 = vmatpush.bf16.msra.mxu0 %v174
  %180 = vmatpush.bf16.msra.mxu0 %v167
  %181 = vmatpush.bf16.msra.mxu0 %v166
  %182 = vmatpush.bf16.msra.mxu0 %v165
  %183 = vmatpush.bf16.msra.mxu0 %v164
  %184 = vmatmul.bf16.gmra.mxu0 %v60
  %v185 = vpop.f32.mrf.mxu0
  %v186 = vadd.f32 0.0, %v185
  %v187 = vpop.f32.mrf.mxu0
  %v188 = vadd.f32 0.0, %v187
  %189 = vdwg.mxu0
  %v190 = vmax.f32 %v134, %v186
  %v191 = vmax.f32 %v135, %v188
  %s192 = scalar_lea.vmem %s1, 108
  %v193 = vld [vmem:[%s192] sm:$0xf]
  %v194 = vld [vmem:[%s192 + $0x4] sm:$0xf]
  %v195 = vld [vmem:[%s192 + $0x8] sm:$0xf]
  %v196 = vld [vmem:[%s192 + $0xc] sm:$0xf]
  %v197 = vld [vmem:[%s192 + $0x10] sm:$0xf]
  %v198 = vld [vmem:[%s192 + $0x14] sm:$0xf]
  %v199 = vld [vmem:[%s192 + $0x18] sm:$0xf]
  %v200 = vld [vmem:[%s192 + $0x1c] sm:$0xf]
  %v201 = vld [vmem:[%s192 + $0x20] sm:$0xf]
  %v211 = vunpack.c.l.b16 %v193
  %v212 = vunpack.c.l.b16 %v194
  %v213 = vunpack.c.l.b16 %v195
  %v214 = vunpack.c.l.b16 %v196
  %v215 = vunpack.c.l.b16 %v197
  %v216 = vunpack.c.l.b16 %v198
  %v217 = vunpack.c.l.b16 %v199
  %v218 = vunpack.c.l.b16 %v200
  %v219 = vunpack.c.l.b16 %v201
  %v220 = vpack.c.b16 %v212, %v211
  %v221 = vpack.c.b16 %v214, %v213
  %v222 = vpack.c.b16 %v216, %v215
  %v223 = vpack.c.b16 %v218, %v217
  %v224 = vpack.c.b16 %v219, %v219
  %v230 = vsel %vm62, %v224, 0
  %232 = vmatpush.bf16.msra.mxu0 0
  %233 = vmatpush.bf16.msra.mxu0 0
  %234 = vmatpush.bf16.msra.mxu0 0
  %235 = vmatpush.bf16.msra.mxu0 %v230
  %236 = vmatpush.bf16.msra.mxu0 %v223
  %237 = vmatpush.bf16.msra.mxu0 %v222
  %238 = vmatpush.bf16.msra.mxu0 %v221
  %239 = vmatpush.bf16.msra.mxu0 %v220
  %240 = vmatmul.bf16.gmra.mxu0 %v60
  %v241 = vpop.f32.mrf.mxu0
  %v242 = vadd.f32 0.0, %v241
  %v243 = vpop.f32.mrf.mxu0
  %v244 = vadd.f32 0.0, %v243
  %245 = vdwg.mxu0
  %v246 = vmax.f32 %v190, %v242
  %v247 = vmax.f32 %v191, %v244
  %v248 = vld [vmem:[%s2] sm:$0xff]
  %v249 = vld [vmem:[%s2 + $0x8] sm:$0xff]
  %251 = vset.pattern.permute.xlu0 0
  %252 = vperm.xlu0 %251, %v248
  %v253 = vpop.permute.xlu0 %252
  %256 = vset.pattern.permute.xlu0 0
  %257 = vperm.xlu0 %256, %v249
  %v258 = vpop.permute.xlu0 %257
  %v260 = vadd.f32 %v246, %v253
  %v261 = vadd.f32 %v247, %v258
  %v262 = vmax.f32 %v260, 0.0
  %v263 = vmax.f32 %v261, 0.0
  %264 = vst [vmem:[%s3] sm:$0xff] %v262
  %265 = vst [vmem:[%s3 + $0x8] sm:$0xff] %v263
  // Predicated region
  $region14: #{_lambda_.5} parent=0 // pred_check
    _
  $region15: #{_lambda_.5} parent=0 // pred_check_branch
    %267 = sbr.rel (0) target = $region17
  $region16: #{_lambda_.5} parent=0 // pred_region
    _
  $region17: #{_lambda_.5} parent=0 // pred_fallthru
    _
  // Predicated region
  $region18: #{_lambda_.5} parent=0 // pred_check
    _
  $region19: #{_lambda_.5} parent=0 // pred_check_branch
    %269 = sbr.rel (0) target = $region21
  $region20: #{_lambda_.5} parent=0 // pred_region
    _
  $region21: #{_lambda_.5} parent=0 // pred_fallthru
    _

// kernel: _lambda_.6
$region0: #{_lambda_.6}
  #allocation0 [shape = 'u32[]', space=smem, size = 0x4, offset = 0x4, fixed_abs, tag = 'smem constant byte address 0x4 - core index']
  #allocation1 [shape = 'u32[72,128]{1,0:T(1,128)}', space=vmem, size = 0x9000, scoped, tag = 'internal scratch']
  %s0 = inlined_call_operand.vmem [shape: f32[8,256], index: 0, kind: input, shape index: {}]
  %s1 = inlined_call_operand.vmem [shape: f32[256,8], index: 1, kind: input, shape index: {}]
  %s2 = inlined_call_operand.vmem [shape: f32[1,8], index: 2, kind: input, shape index: {}]
  %s3 = inlined_call_operand.vmem [shape: f32[8,8], index: 3, kind: output, shape index: {}]
  %s4 = sld [smem:[#allocation0]]
  $region22: #{_lambda_.6} parent=0
    _
  %s6 = ssub.s32 1, %s4
  %s7 = scalar_select 0, %s6, %s4
  // Predicated region
  $region2: #{_lambda_.6} parent=0 // pred_check
    _
  $region3: #{_lambda_.6} parent=0 // pred_check_branch
    %9 = sbr.rel (0) target = $region5
  $region4: #{_lambda_.6} parent=0 // pred_region
    _
  $region5: #{_lambda_.6} parent=0 // pred_fallthru
    _
  // Predicated region
  $region6: #{_lambda_.6} parent=0 // pred_check
    _
  $region7: #{_lambda_.6} parent=0 // pred_check_branch
    %11 = sbr.rel (0) target = $region9
  $region8: #{_lambda_.6} parent=0 // pred_region
    _
  $region9: #{_lambda_.6} parent=0 // pred_fallthru
    _
  // Predicated region
  $region10: #{_lambda_.6} parent=0 // pred_check
    _
  $region11: #{_lambda_.6} parent=0 // pred_check_branch
    %13 = sbr.rel (0) target = $region13
  $region12: #{_lambda_.6} parent=0 // pred_region
    _
  $region13: #{_lambda_.6} parent=0 // pred_fallthru
    _
  %v14 = vld [vmem:[%s0] sm:$0xff]
  %v15 = vld [vmem:[%s0 + $0x8] sm:$0xff]
  %v16 = vld [vmem:[%s1] sm:$0xff]
  %v17 = vld [vmem:[%s1 + $0x8] sm:$0xff]
  %v18 = vld [vmem:[%s1 + $0x10] sm:$0xff]
  %v19 = vld [vmem:[%s1 + $0x18] sm:$0xff]
  %v20 = vld [vmem:[%s1 + $0x20] sm:$0xff]
  %v21 = vld [vmem:[%s1 + $0x28] sm:$0xff]
  %v22 = vld [vmem:[%s1 + $0x30] sm:$0xff]
  %v23 = vld [vmem:[%s1 + $0x38] sm:$0xff]
  %v24 = vld [vmem:[%s1 + $0x40] sm:$0xff]
  %v25 = vld [vmem:[%s1 + $0x48] sm:$0xff]
  %v26 = vld [vmem:[%s1 + $0x50] sm:$0xff]
  %v27 = vld [vmem:[%s1 + $0x58] sm:$0xff]
  %v28 = vld [vmem:[%s1 + $0x60] sm:$0xff]
  %v29 = vld [vmem:[%s1 + $0x68] sm:$0xff]
  %v30 = vld [vmem:[%s1 + $0x70] sm:$0xff]
  %v31 = vld [vmem:[%s1 + $0x78] sm:$0xff]
  %v32 = vld [vmem:[%s1 + $0x80] sm:$0xff]
  %v33 = vld [vmem:[%s1 + $0x88] sm:$0xff]
  %v34 = vld [vmem:[%s1 + $0x90] sm:$0xff]
  %v35 = vld [vmem:[%s1 + $0x98] sm:$0xff]
  %v36 = vld [vmem:[%s1 + $0xa0] sm:$0xff]
  %v37 = vld [vmem:[%s1 + $0xa8] sm:$0xff]
  %v38 = vld [vmem:[%s1 + $0xb0] sm:$0xff]
  %v39 = vld [vmem:[%s1 + $0xb8] sm:$0xff]
  %v40 = vld [vmem:[%s1 + $0xc0] sm:$0xff]
  %v41 = vld [vmem:[%s1 + $0xc8] sm:$0xff]
  %v42 = vld [vmem:[%s1 + $0xd0] sm:$0xff]
  %v43 = vld [vmem:[%s1 + $0xd8] sm:$0xff]
  %v44 = vld [vmem:[%s1 + $0xe0] sm:$0xff]
  %v45 = vld [vmem:[%s1 + $0xe8] sm:$0xff]
  %v46 = vld [vmem:[%s1 + $0xf0] sm:$0xff]
  %v47 = vld [vmem:[%s1 + $0xf8] sm:$0xff]
  %v48 = vld [vmem:[%s2] sm:$0x1]
  %v50 = vperm.slane %v48, 0
  %52 = vmatpush.msra.mxu0 %v31
  %53 = vmatpush.msra.mxu0 %v30
  %54 = vmatpush.msra.mxu0 %v29
  %55 = vmatpush.msra.mxu0 %v28
  %56 = vmatpush.msra.mxu0 %v27
  %57 = vmatpush.msra.mxu0 %v26
  %58 = vmatpush.msra.mxu0 %v25
  %59 = vmatpush.msra.mxu0 %v24
  %60 = vmatpush.msra.mxu0 %v23
  %61 = vmatpush.msra.mxu0 %v22
  %62 = vmatpush.msra.mxu0 %v21
  %63 = vmatpush.msra.mxu0 %v20
  %64 = vmatpush.msra.mxu0 %v19
  %65 = vmatpush.msra.mxu0 %v18
  %66 = vmatpush.msra.mxu0 %v17
  %67 = vmatpush.msra.mxu0 %v16
  %68 = vmatmul.f32.gmra.mxu0 %v14
  %v69 = vpop.f32.mrf.mxu0
  %v70 = vadd.f32 %v50, %v69
  %71 = vdwg.mxu0
  %72 = vmatpush.msra.mxu0 %v47
  %73 = vmatpush.msra.mxu0 %v46
  %74 = vmatpush.msra.mxu0 %v45
  %75 = vmatpush.msra.mxu0 %v44
  %76 = vmatpush.msra.mxu0 %v43
  %77 = vmatpush.msra.mxu0 %v42
  %78 = vmatpush.msra.mxu0 %v41
  %79 = vmatpush.msra.mxu0 %v40
  %80 = vmatpush.msra.mxu0 %v39
  %81 = vmatpush.msra.mxu0 %v38
  %82 = vmatpush.msra.mxu0 %v37
  %83 = vmatpush.msra.mxu0 %v36
  %84 = vmatpush.msra.mxu0 %v35
  %85 = vmatpush.msra.mxu0 %v34
  %86 = vmatpush.msra.mxu0 %v33
  %87 = vmatpush.msra.mxu0 %v32
  %88 = vmatmul.f32.gmra.mxu0 %v15
  %v89 = vpop.f32.mrf.mxu0
  %v90 = vadd.f32 %v70, %v89
  %91 = vdwg.mxu0
  %v92 = vmax.f32 %v90, 0.0
  %v93 = vtanh.pop %v92
  %v94 = vmul.f32 %v93, 1.5707964
  %vm95 = vcmask 64512
  %96 = vst.msk [vmem:[%s3] sm:$0xff] %vm95, %v94
  // Predicated region
  $region14: #{_lambda_.6} parent=0 // pred_check
    _
  $region15: #{_lambda_.6} parent=0 // pred_check_branch
    %98 = sbr.rel (0) target = $region17
  $region16: #{_lambda_.6} parent=0 // pred_region
    _
  $region17: #{_lambda_.6} parent=0 // pred_fallthru
    _
  // Predicated region
  $region18: #{_lambda_.6} parent=0 // pred_check
    _
  $region19: #{_lambda_.6} parent=0 // pred_check_branch
    %100 = sbr.rel (0) target = $region21
  $region20: #{_lambda_.6} parent=0 // pred_region
    _
  $region21: #{_lambda_.6} parent=0 // pred_fallthru
    _

// kernel: _lambda_.7
$region0: #{_lambda_.7}
  #allocation0 [shape = 'u32[]', space=smem, size = 0x4, offset = 0x4, fixed_abs, tag = 'smem constant byte address 0x4 - core index']
  #allocation1 [shape = 'u32[72,128]{1,0:T(1,128)}', space=vmem, size = 0x9000, scoped, tag = 'internal scratch']
  %s0 = inlined_call_operand.vmem [shape: f32[8,1024], index: 0, kind: input, shape index: {}]
  %s1 = inlined_call_operand.vmem [shape: f32[1024,3], index: 1, kind: input, shape index: {}]
  %s2 = inlined_call_operand.vmem [shape: f32[1,3], index: 2, kind: input, shape index: {}]
  %s3 = inlined_call_operand.vmem [shape: f32[8,3], index: 3, kind: output, shape index: {}]
  %s4 = sld [smem:[#allocation0]]
  $region22: #{_lambda_.7} parent=0
    _
  %s6 = ssub.s32 1, %s4
  %s7 = scalar_select 0, %s6, %s4
  // Predicated region
  $region2: #{_lambda_.7} parent=0 // pred_check
    _
  $region3: #{_lambda_.7} parent=0 // pred_check_branch
    %9 = sbr.rel (0) target = $region5
  $region4: #{_lambda_.7} parent=0 // pred_region
    _
  $region5: #{_lambda_.7} parent=0 // pred_fallthru
    _
  // Predicated region
  $region6: #{_lambda_.7} parent=0 // pred_check
    _
  $region7: #{_lambda_.7} parent=0 // pred_check_branch
    %11 = sbr.rel (0) target = $region9
  $region8: #{_lambda_.7} parent=0 // pred_region
    _
  $region9: #{_lambda_.7} parent=0 // pred_fallthru
    _
  // Predicated region
  $region10: #{_lambda_.7} parent=0 // pred_check
    _
  $region11: #{_lambda_.7} parent=0 // pred_check_branch
    %13 = sbr.rel (0) target = $region13
  $region12: #{_lambda_.7} parent=0 // pred_region
    _
  $region13: #{_lambda_.7} parent=0 // pred_fallthru
    _
  %v14 = vld [vmem:[%s0] sm:$0xff]
  %v15 = vld [vmem:[%s0 + $0x8] sm:$0xff]
  %v16 = vld [vmem:[%s0 + $0x10] sm:$0xff]
  %v17 = vld [vmem:[%s0 + $0x18] sm:$0xff]
  %v18 = vld [vmem:[%s0 + $0x20] sm:$0xff]
  %v19 = vld [vmem:[%s0 + $0x28] sm:$0xff]
  %v20 = vld [vmem:[%s0 + $0x30] sm:$0xff]
  %v21 = vld [vmem:[%s0 + $0x38] sm:$0xff]
  %v22 = vld [vmem:[%s1] sm:$0xff]
  %v23 = vld [vmem:[%s1 + $0x8] sm:$0xff]
  %v24 = vld [vmem:[%s1 + $0x10] sm:$0xff]
  %v25 = vld [vmem:[%s1 + $0x18] sm:$0xff]
  %v26 = vld [vmem:[%s1 + $0x20] sm:$0xff]
  %v27 = vld [vmem:[%s1 + $0x28] sm:$0xff]
  %v28 = vld [vmem:[%s1 + $0x30] sm:$0xff]
  %v29 = vld [vmem:[%s1 + $0x38] sm:$0xff]
  %v30 = vld [vmem:[%s1 + $0x40] sm:$0xff]
  %v31 = vld [vmem:[%s1 + $0x48] sm:$0xff]
  %v32 = vld [vmem:[%s1 + $0x50] sm:$0xff]
  %v33 = vld [vmem:[%s1 + $0x58] sm:$0xff]
  %v34 = vld [vmem:[%s1 + $0x60] sm:$0xff]
  %v35 = vld [vmem:[%s1 + $0x68] sm:$0xff]
  %v36 = vld [vmem:[%s1 + $0x70] sm:$0xff]
  %v37 = vld [vmem:[%s1 + $0x78] sm:$0xff]
  %v38 = vld [vmem:[%s1 + $0x80] sm:$0xff]
  %v39 = vld [vmem:[%s1 + $0x88] sm:$0xff]
  %v40 = vld [vmem:[%s1 + $0x90] sm:$0xff]
  %v41 = vld [vmem:[%s1 + $0x98] sm:$0xff]
  %v42 = vld [vmem:[%s1 + $0xa0] sm:$0xff]
  %v43 = vld [vmem:[%s1 + $0xa8] sm:$0xff]
  %v44 = vld [vmem:[%s1 + $0xb0] sm:$0xff]
  %v45 = vld [vmem:[%s1 + $0xb8] sm:$0xff]
  %v46 = vld [vmem:[%s1 + $0xc0] sm:$0xff]
  %v47 = vld [vmem:[%s1 + $0xc8] sm:$0xff]
  %v48 = vld [vmem:[%s1 + $0xd0] sm:$0xff]
  %v49 = vld [vmem:[%s1 + $0xd8] sm:$0xff]
  %v50 = vld [vmem:[%s1 + $0xe0] sm:$0xff]
  %v51 = vld [vmem:[%s1 + $0xe8] sm:$0xff]
  %v52 = vld [vmem:[%s1 + $0xf0] sm:$0xff]
  %v53 = vld [vmem:[%s1 + $0xf8] sm:$0xff]
  %v54 = vld [vmem:[%s1 + $0x100] sm:$0xff]
  %v55 = vld [vmem:[%s1 + $0x108] sm:$0xff]
  %v56 = vld [vmem:[%s1 + $0x110] sm:$0xff]
  %v57 = vld [vmem:[%s1 + $0x118] sm:$0xff]
  %v58 = vld [vmem:[%s1 + $0x120] sm:$0xff]
  %v59 = vld [vmem:[%s1 + $0x128] sm:$0xff]
  %v60 = vld [vmem:[%s1 + $0x130] sm:$0xff]
  %v61 = vld [vmem:[%s1 + $0x138] sm:$0xff]
  %v62 = vld [vmem:[%s1 + $0x140] sm:$0xff]
  %v63 = vld [vmem:[%s1 + $0x148] sm:$0xff]
  %v64 = vld [vmem:[%s1 + $0x150] sm:$0xff]
  %v65 = vld [vmem:[%s1 + $0x158] sm:$0xff]
  %v66 = vld [vmem:[%s1 + $0x160] sm:$0xff]
  %v67 = vld [vmem:[%s1 + $0x168] sm:$0xff]
  %v68 = vld [vmem:[%s1 + $0x170] sm:$0xff]
  %v69 = vld [vmem:[%s1 + $0x178] sm:$0xff]
  %v70 = vld [vmem:[%s1 + $0x180] sm:$0xff]
  %v71 = vld [vmem:[%s1 + $0x188] sm:$0xff]
  %v72 = vld [vmem:[%s1 + $0x190] sm:$0xff]
  %v73 = vld [vmem:[%s1 + $0x198] sm:$0xff]
  %v74 = vld [vmem:[%s1 + $0x1a0] sm:$0xff]
  %v75 = vld [vmem:[%s1 + $0x1a8] sm:$0xff]
  %v76 = vld [vmem:[%s1 + $0x1b0] sm:$0xff]
  %v77 = vld [vmem:[%s1 + $0x1b8] sm:$0xff]
  %v78 = vld [vmem:[%s1 + $0x1c0] sm:$0xff]
  %v79 = vld [vmem:[%s1 + $0x1c8] sm:$0xff]
  %v80 = vld [vmem:[%s1 + $0x1d0] sm:$0xff]
  %v81 = vld [vmem:[%s1 + $0x1d8] sm:$0xff]
  %v82 = vld [vmem:[%s1 + $0x1e0] sm:$0xff]
  %v83 = vld [vmem:[%s1 + $0x1e8] sm:$0xff]
  %v84 = vld [vmem:[%s1 + $0x1f0] sm:$0xff]
  %v85 = vld [vmem:[%s1 + $0x1f8] sm:$0xff]
  %v86 = vld [vmem:[%s1 + $0x200] sm:$0xff]
  %v87 = vld [vmem:[%s1 + $0x208] sm:$0xff]
  %v88 = vld [vmem:[%s1 + $0x210] sm:$0xff]
  %v89 = vld [vmem:[%s1 + $0x218] sm:$0xff]
  %v90 = vld [vmem:[%s1 + $0x220] sm:$0xff]
  %v91 = vld [vmem:[%s1 + $0x228] sm:$0xff]
  %v92 = vld [vmem:[%s1 + $0x230] sm:$0xff]
  %v93 = vld [vmem:[%s1 + $0x238] sm:$0xff]
  %v94 = vld [vmem:[%s1 + $0x240] sm:$0xff]
  %v95 = vld [vmem:[%s1 + $0x248] sm:$0xff]
  %v96 = vld [vmem:[%s1 + $0x250] sm:$0xff]
  %v97 = vld [vmem:[%s1 + $0x258] sm:$0xff]
  %v98 = vld [vmem:[%s1 + $0x260] sm:$0xff]
  %v99 = vld [vmem:[%s1 + $0x268] sm:$0xff]
  %v100 = vld [vmem:[%s1 + $0x270] sm:$0xff]
  %v101 = vld [vmem:[%s1 + $0x278] sm:$0xff]
  %v102 = vld [vmem:[%s1 + $0x280] sm:$0xff]
  %v103 = vld [vmem:[%s1 + $0x288] sm:$0xff]
  %v104 = vld [vmem:[%s1 + $0x290] sm:$0xff]
  %v105 = vld [vmem:[%s1 + $0x298] sm:$0xff]
  %v106 = vld [vmem:[%s1 + $0x2a0] sm:$0xff]
  %v107 = vld [vmem:[%s1 + $0x2a8] sm:$0xff]
  %v108 = vld [vmem:[%s1 + $0x2b0] sm:$0xff]
  %v109 = vld [vmem:[%s1 + $0x2b8] sm:$0xff]
  %v110 = vld [vmem:[%s1 + $0x2c0] sm:$0xff]
  %v111 = vld [vmem:[%s1 + $0x2c8] sm:$0xff]
  %v112 = vld [vmem:[%s1 + $0x2d0] sm:$0xff]
  %v113 = vld [vmem:[%s1 + $0x2d8] sm:$0xff]
  %v114 = vld [vmem:[%s1 + $0x2e0] sm:$0xff]
  %v115 = vld [vmem:[%s1 + $0x2e8] sm:$0xff]
  %v116 = vld [vmem:[%s1 + $0x2f0] sm:$0xff]
  %v117 = vld [vmem:[%s1 + $0x2f8] sm:$0xff]
  %v118 = vld [vmem:[%s1 + $0x300] sm:$0xff]
  %v119 = vld [vmem:[%s1 + $0x308] sm:$0xff]
  %v120 = vld [vmem:[%s1 + $0x310] sm:$0xff]
  %v121 = vld [vmem:[%s1 + $0x318] sm:$0xff]
  %v122 = vld [vmem:[%s1 + $0x320] sm:$0xff]
  %v123 = vld [vmem:[%s1 + $0x328] sm:$0xff]
  %v124 = vld [vmem:[%s1 + $0x330] sm:$0xff]
  %v125 = vld [vmem:[%s1 + $0x338] sm:$0xff]
  %v126 = vld [vmem:[%s1 + $0x340] sm:$0xff]
  %v127 = vld [vmem:[%s1 + $0x348] sm:$0xff]
  %v128 = vld [vmem:[%s1 + $0x350] sm:$0xff]
  %v129 = vld [vmem:[%s1 + $0x358] sm:$0xff]
  %v130 = vld [vmem:[%s1 + $0x360] sm:$0xff]
  %v131 = vld [vmem:[%s1 + $0x368] sm:$0xff]
  %v132 = vld [vmem:[%s1 + $0x370] sm:$0xff]
  %v133 = vld [vmem:[%s1 + $0x378] sm:$0xff]
  %v134 = vld [vmem:[%s1 + $0x380] sm:$0xff]
  %v135 = vld [vmem:[%s1 + $0x388] sm:$0xff]
  %v136 = vld [vmem:[%s1 + $0x390] sm:$0xff]
  %v137 = vld [vmem:[%s1 + $0x398] sm:$0xff]
  %v138 = vld [vmem:[%s1 + $0x3a0] sm:$0xff]
  %v139 = vld [vmem:[%s1 + $0x3a8] sm:$0xff]
  %v140 = vld [vmem:[%s1 + $0x3b0] sm:$0xff]
  %v141 = vld [vmem:[%s1 + $0x3b8] sm:$0xff]
  %v142 = vld [vmem:[%s1 + $0x3c0] sm:$0xff]
  %v143 = vld [vmem:[%s1 + $0x3c8] sm:$0xff]
  %v144 = vld [vmem:[%s1 + $0x3d0] sm:$0xff]
  %v145 = vld [vmem:[%s1 + $0x3d8] sm:$0xff]
  %v146 = vld [vmem:[%s1 + $0x3e0] sm:$0xff]
  %v147 = vld [vmem:[%s1 + $0x3e8] sm:$0xff]
  %v148 = vld [vmem:[%s1 + $0x3f0] sm:$0xff]
  %v149 = vld [vmem:[%s1 + $0x3f8] sm:$0xff]
  %v150 = vld [vmem:[%s2] sm:$0x1]
  %v152 = vperm.slane %v150, 0
  %154 = vmatpush.msra.mxu0 %v37
  %155 = vmatpush.msra.mxu0 %v36
  %156 = vmatpush.msra.mxu0 %v35
  %157 = vmatpush.msra.mxu0 %v34
  %158 = vmatpush.msra.mxu0 %v33
  %159 = vmatpush.msra.mxu0 %v32
  %160 = vmatpush.msra.mxu0 %v31
  %161 = vmatpush.msra.mxu0 %v30
  %162 = vmatpush.msra.mxu0 %v29
  %163 = vmatpush.msra.mxu0 %v28
  %164 = vmatpush.msra.mxu0 %v27
  %165 = vmatpush.msra.mxu0 %v26
  %166 = vmatpush.msra.mxu0 %v25
  %167 = vmatpush.msra.mxu0 %v24
  %168 = vmatpush.msra.mxu0 %v23
  %169 = vmatpush.msra.mxu0 %v22
  %170 = vmatmul.f32.gmra.mxu0 %v14
  %v171 = vpop.f32.mrf.mxu0
  %v172 = vadd.f32 %v152, %v171
  %173 = vdwg.mxu0
  %174 = vmatpush.msra.mxu0 %v53
  %175 = vmatpush.msra.mxu0 %v52
  %176 = vmatpush.msra.mxu0 %v51
  %177 = vmatpush.msra.mxu0 %v50
  %178 = vmatpush.msra.mxu0 %v49
  %179 = vmatpush.msra.mxu0 %v48
  %180 = vmatpush.msra.mxu0 %v47
  %181 = vmatpush.msra.mxu0 %v46
  %182 = vmatpush.msra.mxu0 %v45
  %183 = vmatpush.msra.mxu0 %v44
  %184 = vmatpush.msra.mxu0 %v43
  %185 = vmatpush.msra.mxu0 %v42
  %186 = vmatpush.msra.mxu0 %v41
  %187 = vmatpush.msra.mxu0 %v40
  %188 = vmatpush.msra.mxu0 %v39
  %189 = vmatpush.msra.mxu0 %v38
  %190 = vmatmul.f32.gmra.mxu0 %v15
  %v191 = vpop.f32.mrf.mxu0
  %v192 = vadd.f32 %v172, %v191
  %193 = vdwg.mxu0
  %194 = vmatpush.msra.mxu0 %v69
  %195 = vmatpush.msra.mxu0 %v68
  %196 = vmatpush.msra.mxu0 %v67
  %197 = vmatpush.msra.mxu0 %v66
  %198 = vmatpush.msra.mxu0 %v65
  %199 = vmatpush.msra.mxu0 %v64
  %200 = vmatpush.msra.mxu0 %v63
  %201 = vmatpush.msra.mxu0 %v62
  %202 = vmatpush.msra.mxu0 %v61
  %203 = vmatpush.msra.mxu0 %v60
  %204 = vmatpush.msra.mxu0 %v59
  %205 = vmatpush.msra.mxu0 %v58
  %206 = vmatpush.msra.mxu0 %v57
  %207 = vmatpush.msra.mxu0 %v56
  %208 = vmatpush.msra.mxu0 %v55
  %209 = vmatpush.msra.mxu0 %v54
  %210 = vmatmul.f32.gmra.mxu0 %v16
  %v211 = vpop.f32.mrf.mxu0
  %v212 = vadd.f32 %v192, %v211
  %213 = vdwg.mxu0
  %214 = vmatpush.msra.mxu0 %v85
  %215 = vmatpush.msra.mxu0 %v84
  %216 = vmatpush.msra.mxu0 %v83
  %217 = vmatpush.msra.mxu0 %v82
  %218 = vmatpush.msra.mxu0 %v81
  %219 = vmatpush.msra.mxu0 %v80
  %220 = vmatpush.msra.mxu0 %v79
  %221 = vmatpush.msra.mxu0 %v78
  %222 = vmatpush.msra.mxu0 %v77
  %223 = vmatpush.msra.mxu0 %v76
  %224 = vmatpush.msra.mxu0 %v75
  %225 = vmatpush.msra.mxu0 %v74
  %226 = vmatpush.msra.mxu0 %v73
  %227 = vmatpush.msra.mxu0 %v72
  %228 = vmatpush.msra.mxu0 %v71
  %229 = vmatpush.msra.mxu0 %v70
  %230 = vmatmul.f32.gmra.mxu0 %v17
  %v231 = vpop.f32.mrf.mxu0
  %v232 = vadd.f32 %v212, %v231
  %233 = vdwg.mxu0
  %234 = vmatpush.msra.mxu0 %v101
  %235 = vmatpush.msra.mxu0 %v100
  %236 = vmatpush.msra.mxu0 %v99
  %237 = vmatpush.msra.mxu0 %v98
  %238 = vmatpush.msra.mxu0 %v97
  %239 = vmatpush.msra.mxu0 %v96
  %240 = vmatpush.msra.mxu0 %v95
  %241 = vmatpush.msra.mxu0 %v94
  %242 = vmatpush.msra.mxu0 %v93
  %243 = vmatpush.msra.mxu0 %v92
  %244 = vmatpush.msra.mxu0 %v91
  %245 = vmatpush.msra.mxu0 %v90
  %246 = vmatpush.msra.mxu0 %v89
  %247 = vmatpush.msra.mxu0 %v88
  %248 = vmatpush.msra.mxu0 %v87
  %249 = vmatpush.msra.mxu0 %v86
  %250 = vmatmul.f32.gmra.mxu0 %v18
  %v251 = vpop.f32.mrf.mxu0
  %v252 = vadd.f32 %v232, %v251
  %253 = vdwg.mxu0
  %254 = vmatpush.msra.mxu0 %v117
  %255 = vmatpush.msra.mxu0 %v116
  %256 = vmatpush.msra.mxu0 %v115
  %257 = vmatpush.msra.mxu0 %v114
  %258 = vmatpush.msra.mxu0 %v113
  %259 = vmatpush.msra.mxu0 %v112
  %260 = vmatpush.msra.mxu0 %v111
  %261 = vmatpush.msra.mxu0 %v110
  %262 = vmatpush.msra.mxu0 %v109
  %263 = vmatpush.msra.mxu0 %v108
  %264 = vmatpush.msra.mxu0 %v107
  %265 = vmatpush.msra.mxu0 %v106
  %266 = vmatpush.msra.mxu0 %v105
  %267 = vmatpush.msra.mxu0 %v104
  %268 = vmatpush.msra.mxu0 %v103
  %269 = vmatpush.msra.mxu0 %v102
  %270 = vmatmul.f32.gmra.mxu0 %v19
  %v271 = vpop.f32.mrf.mxu0
  %v272 = vadd.f32 %v252, %v271
  %273 = vdwg.mxu0
  %274 = vmatpush.msra.mxu0 %v133
  %275 = vmatpush.msra.mxu0 %v132
  %276 = vmatpush.msra.mxu0 %v131
  %277 = vmatpush.msra.mxu0 %v130
  %278 = vmatpush.msra.mxu0 %v129
  %279 = vmatpush.msra.mxu0 %v128
  %280 = vmatpush.msra.mxu0 %v127
  %281 = vmatpush.msra.mxu0 %v126
  %282 = vmatpush.msra.mxu0 %v125
  %283 = vmatpush.msra.mxu0 %v124
  %284 = vmatpush.msra.mxu0 %v123
  %285 = vmatpush.msra.mxu0 %v122
  %286 = vmatpush.msra.mxu0 %v121
  %287 = vmatpush.msra.mxu0 %v120
  %288 = vmatpush.msra.mxu0 %v119
  %289 = vmatpush.msra.mxu0 %v118
  %290 = vmatmul.f32.gmra.mxu0 %v20
  %v291 = vpop.f32.mrf.mxu0
  %v292 = vadd.f32 %v272, %v291
  %293 = vdwg.mxu0
  %294 = vmatpush.msra.mxu0 %v149
  %295 = vmatpush.msra.mxu0 %v148
  %296 = vmatpush.msra.mxu0 %v147
  %297 = vmatpush.msra.mxu0 %v146
  %298 = vmatpush.msra.mxu0 %v145
  %299 = vmatpush.msra.mxu0 %v144
  %300 = vmatpush.msra.mxu0 %v143
  %301 = vmatpush.msra.mxu0 %v142
  %302 = vmatpush.msra.mxu0 %v141
  %303 = vmatpush.msra.mxu0 %v140
  %304 = vmatpush.msra.mxu0 %v139
  %305 = vmatpush.msra.mxu0 %v138
  %306 = vmatpush.msra.mxu0 %v137
  %307 = vmatpush.msra.mxu0 %v136
  %308 = vmatpush.msra.mxu0 %v135
  %309 = vmatpush.msra.mxu0 %v134
  %310 = vmatmul.f32.gmra.mxu0 %v21
  %v311 = vpop.f32.mrf.mxu0
  %v312 = vadd.f32 %v292, %v311
  %313 = vdwg.mxu0
  %vm314 = vcmask 23552
  %315 = vst.msk [vmem:[%s3] sm:$0xff] %vm314, %v312
  // Predicated region
  $region14: #{_lambda_.7} parent=0 // pred_check
    _
  $region15: #{_lambda_.7} parent=0 // pred_check_branch
    %317 = sbr.rel (0) target = $region17
  $region16: #{_lambda_.7} parent=0 // pred_region
    _
  $region17: #{_lambda_.7} parent=0 // pred_fallthru
    _
  // Predicated region
  $region18: #{_lambda_.7} parent=0 // pred_check
    _
  $region19: #{_lambda_.7} parent=0 // pred_check_branch
    %319 = sbr.rel (0) target = $region21
  $region20: #{_lambda_.7} parent=0 // pred_region
    _
  $region21: #{_lambda_.7} parent=0 // pred_fallthru
    _

</llo_original>
